<compile_context>
chip_gen: v7x
topology: tpu7x:2x2x1
jax: 0.10.0
libtpu: 0.0.40
codegen_flags: <defaults>
</compile_context>

<pallas_src>
import math

import jax
import jax.numpy as jnp
from jax import lax
from jax.experimental import pallas as pl
from jax.experimental.pallas import tpu as pltpu

# ----------------------------------------------------------------------------
# Hyperparameters (decoder_embed_dim = 256, max_text_length_for_rknn = 16,
# bsz = 1 per the module).
# ----------------------------------------------------------------------------
BSZ = 1
EMBED_DIM = 256
NUM_HEADS = 8
HEAD_DIM = EMBED_DIM // NUM_HEADS      # 32
FFN_DIM = 512
NUM_LAYERS = 2
MAX_TEXT_LEN = 16                      # self-attn key length after cache append
PREV_LEN = MAX_TEXT_LEN - 1            # cached key/value length (15)
NEW_ROW = PREV_LEN                     # row the new token's K/V is appended at
ENC_LEN = 16                           # encoder sequence length
VOCAB = 512
LN_EPS = 1e-5
SCALING = HEAD_DIM ** -0.5             # fairseq MultiheadAttention q-scaling
NEG_INF = -1e9
MASK_ROWS = MAX_TEXT_LEN + ENC_LEN     # packed [decoder_pad ; encoder_pad]

# rows of the packed per-layer (L, NUM_VEC, D) small-parameter slab
(VEC_SO_B, VEC_SLN_G, VEC_SLN_B, VEC_EQ_B, VEC_EO_B,
 VEC_ELN_G, VEC_ELN_B, VEC_FC2_B, VEC_FLN_G, VEC_FLN_B) = range(10)
NUM_VEC = 10


# ----------------------------------------------------------------------------
# BlockSpec helpers
# ----------------------------------------------------------------------------
def _const_spec(shape):
    """Full-array block with a constant index -> DMA'd once, reused by all layers."""
    return pl.BlockSpec(tuple(shape), lambda *_: (0,) * len(shape))


def _layer_spec(shape):
    """Per-layer block of a (L, *shape) stacked tensor -> pipelined over the grid."""
    nd = len(shape)
    return pl.BlockSpec((1,) + tuple(shape), lambda l: (l,) + (0,) * nd)


def _layer_norm(y, gamma, beta):
    mu = jnp.mean(y, axis=-1, keepdims=True)
    var = jnp.mean(jnp.square(y - mu), axis=-1, keepdims=True)
    return (y - mu) * lax.rsqrt(var + LN_EPS) * gamma + beta


# ----------------------------------------------------------------------------
# Per-sequence encoder K/V projection kernel (runs once, not per token)
# ----------------------------------------------------------------------------
def _enc_kv_kernel(enc_ref, w_ref, b_ref, out_ref):
    y = jnp.dot(enc_ref[...].astype(jnp.bfloat16), w_ref[0],
                preferred_element_type=jnp.float32) + b_ref[0]
    out_ref[0] = y.astype(jnp.bfloat16)


def precompute_encoder_kv(params, encoder_out):
    """encoder_out:(S, bsz, D) -> (L, S, 2D) bf16 cached cross-attn K/V."""
    enc = encoder_out.reshape(-1, EMBED_DIM).astype(jnp.float32)          # (S, D)
    return pl.pallas_call(
        _enc_kv_kernel,
        grid=(NUM_LAYERS,),
        in_specs=[_const_spec((ENC_LEN, EMBED_DIM)),
                  _layer_spec((EMBED_DIM, 2 * EMBED_DIM)),
                  _layer_spec((1, 2 * EMBED_DIM))],
        out_specs=_layer_spec((ENC_LEN, 2 * EMBED_DIM)),
        out_shape=jax.ShapeDtypeStruct((NUM_LAYERS, ENC_LEN, 2 * EMBED_DIM),
                                       jnp.bfloat16),
        compiler_params=pltpu.CompilerParams(dimension_semantics=("parallel",)),
    )(enc, params["ekv_w"], params["ekv_b"])


def prepare_sequence(params, encoder_out, encoder_pad_mask, decoder_pad_mask):
    """Once per sequence: encoder K/V cache + packed additive masks."""
    enc_kv = precompute_encoder_kv(params, encoder_out)
    dec_add = jnp.where(decoder_pad_mask, NEG_INF, 0.0).astype(jnp.float32)
    enc_add = jnp.where(encoder_pad_mask, NEG_INF, 0.0).astype(jnp.float32)
    masks = jnp.concatenate([dec_add.reshape(MAX_TEXT_LEN, 1),
                             enc_add.reshape(ENC_LEN, 1)], axis=0)        # (32, 1)
    return enc_kv, masks


# ----------------------------------------------------------------------------
# Fused per-token decoder-step kernel: grid over layers, h carried in scratch
# ----------------------------------------------------------------------------
def _decoder_step_kernel(x_ref, masks_ref, embed_wt_ref, enc_kv_ref,
                         k_in_ref, v_in_ref,
                         sqkv_w_ref, so_w_ref, eq_w_ref, eo_w_ref,
                         f1_w_ref, f2_w_ref,
                         sqkv_b_ref, f1_b_ref, vecs_ref,
                         logits_ref, k_out_ref, v_out_ref,
                         h_ref):
    layer = pl.program_id(0)

    @pl.when(layer == 0)
    def _():
        h_ref[...] = x_ref[...]

    h = h_ref[...]                                            # (1, D) f32

    dec_mask = masks_ref[0:MAX_TEXT_LEN, :]                   # (T, 1) additive
    enc_mask = masks_ref[MAX_TEXT_LEN:MASK_ROWS, :]           # (S, 1) additive

    # 0/1 head selector sel[d, h] = (d // HEAD_DIM == h), rebuilt in-register.
    d_idx = lax.broadcasted_iota(jnp.int32, (EMBED_DIM, NUM_HEADS), 0)
    h_idx = lax.broadcasted_iota(jnp.int32, (EMBED_DIM, NUM_HEADS), 1)
    sel = jnp.where(d_idx // HEAD_DIM == h_idx, 1.0, 0.0).astype(jnp.bfloat16)

    def vec(i):                                               # (1, D) f32 small param
        return vecs_ref[0, i:i + 1, :]

    def mm(a, w, bias=None):
        # bf16 MXU inputs, f32 accumulation; bias / elementwise math in f32.
        y = jnp.dot(a.astype(jnp.bfloat16), w, preferred_element_type=jnp.float32)
        return y if bias is None else y + bias

    def mha(q, kmat, vmat, mask_col):
        # Single-query multi-head attention without a per-head loop.
        #   q:(1,D) already scaled; kmat/vmat:(T,D) f32; mask_col:(T,1) additive.
        prod = (q * kmat).astype(jnp.bfloat16)                               # (T, D)
        s = jnp.dot(prod, sel, preferred_element_type=jnp.float32) + mask_col  # (T, H)
        s = s - jnp.max(s, axis=0, keepdims=True)                            # softmax over keys
        p = jnp.exp(s)
        p = p * pl.reciprocal(jnp.sum(p, axis=0, keepdims=True), approx=True)
        # expand probs back to the packed-head lane layout: (T,H) x (D,H)^T -> (T,D)
        pexp = lax.dot_general(p.astype(jnp.bfloat16), sel,
                               (((1,), (1,)), ((), ())),
                               preferred_element_type=jnp.float32)
        return jnp.sum(pexp * vmat, axis=0, keepdims=True)                   # (1, D)

    # ---------------- self attention (fused QKV + in-place cache append) ----
    qkv = mm(h, sqkv_w_ref[0], sqkv_b_ref[0])                 # (1, 3D)
    q = qkv[:, :EMBED_DIM] * SCALING
    new_k = qkv[:, EMBED_DIM:2 * EMBED_DIM]
    new_v = qkv[:, 2 * EMBED_DIM:]
    row = lax.broadcasted_iota(jnp.int32, (MAX_TEXT_LEN, 1), 0)
    is_new = row == NEW_ROW
    k_full = jnp.where(is_new, new_k, k_in_ref[0].astype(jnp.float32))       # (T, D)
    v_full = jnp.where(is_new, new_v, v_in_ref[0].astype(jnp.float32))
    k_out_ref[0] = k_full.astype(jnp.bfloat16)                # aliased cache writeback
    v_out_ref[0] = v_full.astype(jnp.bfloat16)
    attn = mha(q, k_full, v_full, dec_mask)
    h = _layer_norm(h + mm(attn, so_w_ref[0], vec(VEC_SO_B)),
                    vec(VEC_SLN_G), vec(VEC_SLN_B))

    # ---------------- cross attention (encoder K/V precomputed per sequence) ----
    q = mm(h, eq_w_ref[0], vec(VEC_EQ_B)) * SCALING
    ek = enc_kv_ref[0, :, :EMBED_DIM].astype(jnp.float32)
    ev = enc_kv_ref[0, :, EMBED_DIM:].astype(jnp.float32)
    attn = mha(q, ek, ev, enc_mask)
    h = _layer_norm(h + mm(attn, eo_w_ref[0], vec(VEC_EO_B)),
                    vec(VEC_ELN_G), vec(VEC_ELN_B))

    # ---------------- feed-forward ----
    z = jnp.maximum(mm(h, f1_w_ref[0], f1_b_ref[0]), 0.0)     # ReLU
    h = _layer_norm(h + mm(z, f2_w_ref[0], vec(VEC_FC2_B)),
                    vec(VEC_FLN_G), vec(VEC_FLN_B))

    h_ref[...] = h

    # ---------------- final vocab projection on the last grid stage ----
    @pl.when(layer == pl.num_programs(0) - 1)
    def _():
        # F.linear(x, embed_tokens.weight): logits = h @ embed_w.T (no bias)
        logits_ref[...] = jnp.dot(h.astype(jnp.bfloat16), embed_wt_ref[...],
                                  preferred_element_type=jnp.float32)


def decoder_step(params, x, masks, enc_kv, k_cache, v_cache):
    """One incremental decode step == DecoderOnnx.forward (incremental branch).

    x                : (BSZ, 1, D) token embedding (embed_scale * emb + pos)
    masks            : (MASK_ROWS, 1) packed additive [decoder_pad ; encoder_pad]
    enc_kv           : (L, S, 2D) bf16 from precompute_encoder_kv (per sequence)
    k_cache, v_cache : (L, MAX_TEXT_LEN, D) bf16 packed self-attn KV cache; rows
                       [0:PREV_LEN] hold the previous K/V, the new row is written
                       at NEW_ROW.  Updated via input_output_aliases and returned.
    """
    h = x.reshape(BSZ, EMBED_DIM).astype(jnp.float32)

    args = (h, masks, params["embed_wt"], enc_kv, k_cache, v_cache,
            params["sqkv_w"], params["so_w"], params["eq_w"], params["eo_w"],
            params["fc1_w"], params["fc2_w"],
            params["sqkv_b"], params["fc1_b"], params["vecs"])

    D, F, T = EMBED_DIM, FFN_DIM, MAX_TEXT_LEN
    in_specs = [
        _const_spec((1, D)),                    # 0  x
        _const_spec((MASK_ROWS, 1)),            # 1  masks
        _const_spec((D, VOCAB)),                # 2  embed_wt (fetched once, reused)
        _layer_spec((ENC_LEN, 2 * D)),          # 3  enc_kv
        _layer_spec((T, D)),                    # 4  k_cache  (aliased -> out 1)
        _layer_spec((T, D)),                    # 5  v_cache  (aliased -> out 2)
        _layer_spec((D, 3 * D)),                # 6  sqkv_w
        _layer_spec((D, D)),                    # 7  so_w
        _layer_spec((D, D)),                    # 8  eq_w
        _layer_spec((D, D)),                    # 9  eo_w
        _layer_spec((D, F)),                    # 10 fc1_w
        _layer_spec((F, D)),                    # 11 fc2_w
        _layer_spec((1, 3 * D)),                # 12 sqkv_b
        _layer_spec((1, F)),                    # 13 fc1_b
        _layer_spec((NUM_VEC, D)),              # 14 packed small vectors
    ]
    out_shape = (jax.ShapeDtypeStruct((1, VOCAB), jnp.float32),
                 jax.ShapeDtypeStruct((NUM_LAYERS, T, D), jnp.bfloat16),
                 jax.ShapeDtypeStruct((NUM_LAYERS, T, D), jnp.bfloat16))
    out_specs = (_const_spec((1, VOCAB)),
                 _layer_spec((T, D)),
                 _layer_spec((T, D)))

    logits, k_new, v_new = pl.pallas_call(
        _decoder_step_kernel,
        grid=(NUM_LAYERS,),
        in_specs=in_specs,
        out_specs=out_specs,
        out_shape=out_shape,
        scratch_shapes=[pltpu.VMEM((1, EMBED_DIM), jnp.float32)],
        input_output_aliases={4: 1, 5: 2},      # KV caches updated in place
        compiler_params=pltpu.CompilerParams(
            dimension_semantics=("arbitrary",),
            vmem_limit_bytes=16 * 1024 * 1024),
    )(*args)
    return logits.reshape(BSZ, 1, VOCAB), k_new, v_new


# ----------------------------------------------------------------------------
# Cache layout glue: only at sequence boundaries, never in the per-step path
# ----------------------------------------------------------------------------
def pack_kv_cache(incremental_states):
    """torch layout list of (bsz, H, PREV_LEN, hd) -> packed (L, T, D) bf16 K,V."""
    ks, vs = [], []
    for l in range(NUM_LAYERS):
        pk = incremental_states[2 * l][0].transpose(1, 0, 2).reshape(PREV_LEN, EMBED_DIM)
        pv = incremental_states[2 * l + 1][0].transpose(1, 0, 2).reshape(PREV_LEN, EMBED_DIM)
        pad = jnp.zeros((MAX_TEXT_LEN - PREV_LEN, EMBED_DIM), jnp.float32)
        ks.append(jnp.concatenate([pk, pad], axis=0))
        vs.append(jnp.concatenate([pv, pad], axis=0))
    return (jnp.stack(ks).astype(jnp.bfloat16), jnp.stack(vs).astype(jnp.bfloat16))


def unpack_kv_cache(k_cache, v_cache):
    """packed (L, T, D) -> torch-layout list of (bsz, H, T, hd) f32."""
    states = []
    for l in range(NUM_LAYERS):
        k = (k_cache[l].astype(jnp.float32)
             .reshape(MAX_TEXT_LEN, NUM_HEADS, HEAD_DIM).transpose(1, 0, 2)[None])
        v = (v_cache[l].astype(jnp.float32)
             .reshape(MAX_TEXT_LEN, NUM_HEADS, HEAD_DIM).transpose(1, 0, 2)[None])
        states += [k, v]
    return states


# ----------------------------------------------------------------------------
# Deterministic parameter initialization (synthetic; no checkpoint loading).
# Matrices bf16; biases / LN params f32 (randomized so packing order is tested).
# ----------------------------------------------------------------------------
def init_params(key):
    kit = iter(jax.random.split(key, 24))

    def dense(shape):
        fan_in = shape[-2]
        return (jax.random.normal(next(kit), shape, jnp.float32)
                / math.sqrt(fan_in)).astype(jnp.bfloat16)

    def small(shape, scale=0.02):
        return jax.random.normal(next(kit), shape, jnp.float32) * scale

    L, D, F = NUM_LAYERS, EMBED_DIM, FFN_DIM
    p = {
        "sqkv_w": dense((L, D, 3 * D)), "sqkv_b": small((L, 1, 3 * D)),
        "so_w": dense((L, D, D)),       "so_b": small((L, 1, D)),
        "sln_g": 1.0 + small((L, 1, D), 0.05), "sln_b": small((L, 1, D)),
        "eq_w": dense((L, D, D)),       "eq_b": small((L, 1, D)),
        "ekv_w": dense((L, D, 2 * D)),  "ekv_b": small((L, 1, 2 * D)),
        "eo_w": dense((L, D, D)),       "eo_b": small((L, 1, D)),
        "eln_g": 1.0 + small((L, 1, D), 0.05), "eln_b": small((L, 1, D)),
        "fc1_w": dense((L, D, F)),      "fc1_b": small((L, 1, F)),
        "fc2_w": dense((L, F, D)),      "fc2_b": small((L, 1, D)),
        "fln_g": 1.0 + small((L, 1, D), 0.05), "fln_b": small((L, 1, D)),
    }
    embed_w = jax.random.normal(next(kit), (VOCAB, D), jnp.float32) * 0.02
    p["embed_w"] = embed_w                              # f32, embedding lookup
    p["embed_wt"] = embed_w.T.astype(jnp.bfloat16)      # pre-transposed logits matrix
    # packed (L, NUM_VEC, D) small-parameter slab -> one DMA per layer
    p["vecs"] = jnp.concatenate(
        [p["so_b"], p["sln_g"], p["sln_b"], p["eq_b"], p["eo_b"],
         p["eln_g"], p["eln_b"], p["fc2_b"], p["fln_g"], p["fln_b"]], axis=1)
    return p


# ----------------------------------------------------------------------------
# Pure-JAX f32 reference (same math) for the sanity check
# ----------------------------------------------------------------------------
def reference_forward(params, x, encoder_out, encoder_pad_mask, decoder_pad_mask,
                      incremental_states):
    h = x.reshape(1, EMBED_DIM).astype(jnp.float32)
    enc = encoder_out.reshape(ENC_LEN, EMBED_DIM).astype(jnp.float32)
    enc_mask = jnp.where(encoder_pad_mask, NEG_INF, 0.0).reshape(1, ENC_LEN)
    dec_mask = jnp.where(decoder_pad_mask, NEG_INF, 0.0).reshape(1, MAX_TEXT_LEN)

    def ln(y, g, b):
        mu = y.mean(-1, keepdims=True)
        var = ((y - mu) ** 2).mean(-1, keepdims=True)
        return (y - mu) / jnp.sqrt(var + LN_EPS) * g + b

    def mha(q, kmat, vmat, mask):
        qh = q.reshape(NUM_HEADS, HEAD_DIM)
        kh = kmat.reshape(-1, NUM_HEADS, HEAD_DIM).transpose(1, 0, 2)
        vh = vmat.reshape(-1, NUM_HEADS, HEAD_DIM).transpose(1, 0, 2)
        s = jnp.einsum("hd,htd->ht", qh, kh) + mask
        p = jax.nn.softmax(s, axis=-1)
        return jnp.einsum("ht,htd->hd", p, vh).reshape(1, EMBED_DIM)

    W = lambda name, l: params[name][l].astype(jnp.float32)
    states = []
    for l in range(NUM_LAYERS):
        qkv = h @ W("sqkv_w", l) + params["sqkv_b"][l]
        q = qkv[:, :EMBED_DIM] * SCALING
        pk = incremental_states[2 * l][0].transpose(1, 0, 2).reshape(PREV_LEN, EMBED_DIM)
        pv = incremental_states[2 * l + 1][0].transpose(1, 0, 2).reshape(PREV_LEN, EMBED_DIM)
        kf = jnp.concatenate([pk, qkv[:, EMBED_DIM:2 * EMBED_DIM]], axis=0)
        vf = jnp.concatenate([pv, qkv[:, 2 * EMBED_DIM:]], axis=0)
        states += [kf, vf]
        attn = mha(q, kf, vf, dec_mask)
        h = ln(h + attn @ W("so_w", l) + params["so_b"][l],
               params["sln_g"][l], params["sln_b"][l])

        q = (h @ W("eq_w", l) + params["eq_b"][l]) * SCALING
        ekv = enc @ W("ekv_w", l) + params["ekv_b"][l]
        attn = mha(q, ekv[:, :EMBED_DIM], ekv[:, EMBED_DIM:], enc_mask)
        h = ln(h + attn @ W("eo_w", l) + params["eo_b"][l],
               params["eln_g"][l], params["eln_b"][l])

        z = jax.nn.relu(h @ W("fc1_w", l) + params["fc1_b"][l])
        h = ln(h + z @ W("fc2_w", l) + params["fc2_b"][l],
               params["fln_g"][l], params["fln_b"][l])

    logits = h @ params["embed_wt"].astype(jnp.float32)
    return logits.reshape(BSZ, 1, VOCAB), states


# ----------------------------------------------------------------------------
if __name__ == "__main__":
    root = jax.random.PRNGKey(0)
    k_params, k_pos, k_enc = jax.random.split(root, 3)

    params = init_params(k_params)

    # mimic preprocess(): x = embed_scale * embed_tokens(tok) + embed_positions(tok)
    tok_id = 7
    embed_scale = math.sqrt(EMBED_DIM)
    pos_vec = jax.random.normal(k_pos, (BSZ, 1, EMBED_DIM), jnp.float32) * 0.02
    x = embed_scale * params["embed_w"][tok_id].reshape(BSZ, 1, EMBED_DIM) + pos_vec

    encoder_out = jax.random.normal(k_enc, (ENC_LEN, BSZ, EMBED_DIM), jnp.float32) * 0.5
    # last 3 encoder positions are padding
    encoder_pad_mask = (jnp.arange(ENC_LEN)[None, :] >= ENC_LEN - 3)
    # all 15 cached (zero-initialized) positions are padding; new token is valid
    decoder_pad_mask = jnp.concatenate(
        [jnp.ones((BSZ, PREV_LEN), bool), jnp.zeros((BSZ, 1), bool)], axis=1)

    # preprocess(): fresh zero KV cache per layer (torch layout)
    incremental_states = [
        jnp.zeros((BSZ, NUM_HEADS, PREV_LEN, HEAD_DIM), jnp.float32)
        for _ in range(2 * NUM_LAYERS)
    ]

    # -------- per sequence: encoder K/V projection + packed masks + packed cache
    prepare = jax.jit(prepare_sequence)
    enc_kv, masks = prepare(params, encoder_out, encoder_pad_mask, decoder_pad_mask)
    k_cache, v_cache = pack_kv_cache(incremental_states)

    # -------- per token: one fused pallas_call (== DecoderOnnx.forward)
    step = jax.jit(decoder_step)
    logits, k_cache, v_cache = step(params, x, masks, enc_kv, k_cache, v_cache)
    jax.block_until_ready((logits, k_cache, v_cache))

    assert logits.shape == (BSZ, 1, VOCAB)
    self_attn_states = unpack_kv_cache(k_cache, v_cache)     # torch layout (seq boundary only)
    assert len(self_attn_states) == 2 * NUM_LAYERS
    assert self_attn_states[0].shape == (BSZ, NUM_HEADS, MAX_TEXT_LEN, HEAD_DIM)
    assert bool(jnp.all(jnp.isfinite(logits)))

    # sanity check against a pure-JAX f32 reference (loose tolerance: bf16 MXU
    # inputs, bf16 enc-KV / self-KV storage, approx reciprocal in the kernel)
    ref_logits, ref_states = reference_forward(params, x, encoder_out,
                                               encoder_pad_mask, decoder_pad_mask,
                                               incremental_states)
    assert float(jnp.max(jnp.abs(logits - ref_logits))) < 0.1
    for i in range(NUM_LAYERS):
        ref_k = ref_states[2 * i].reshape(MAX_TEXT_LEN, NUM_HEADS, HEAD_DIM).transpose(1, 0, 2)[None]
        ref_v = ref_states[2 * i + 1].reshape(MAX_TEXT_LEN, NUM_HEADS, HEAD_DIM).transpose(1, 0, 2)[None]
        assert float(jnp.max(jnp.abs(self_attn_states[2 * i] - ref_k))) < 0.1
        assert float(jnp.max(jnp.abs(self_attn_states[2 * i + 1] - ref_v))) < 0.1

    print("KERNEL_OK")
</pallas_src>

<mosaic_0001>
module attributes {stable_mosaic.version = 11 : i64} {
  func.func @_enc_kv_kernel(%arg0: i32, %arg1: memref<16x256xf32, #tpu.memory_space<vmem>>, %arg2: memref<1x256x512xbf16, #tpu.memory_space<vmem>>, %arg3: memref<1x1x512xf32, #tpu.memory_space<vmem>>, %arg4: memref<1x16x512xbf16, #tpu.memory_space<vmem>>) attributes {dimension_semantics = [#tpu.dimension_semantics<parallel>], iteration_bounds = array<i64: 2>, scalar_prefetch = 0 : i64, scratch_operands = 0 : i64, tpu.core_type = #tpu.core_type<tc>, window_params = [{pipeline_mode = #tpu.pipeline_mode<synchronous>, transform_indices = @transform_0, window_bounds = array<i64: 16, 256>}, {transform_indices = @transform_1, window_bounds = array<i64: 1, 256, 512>}, {transform_indices = @transform_2, window_bounds = array<i64: 1, 1, 512>}, {transform_indices = @transform_3, window_bounds = array<i64: 1, 16, 512>}]} {
    %c0 = arith.constant 0 : index
    %c0_0 = arith.constant 0 : index
    %0 = vector.load %arg1[%c0, %c0_0] : memref<16x256xf32, #tpu.memory_space<vmem>>, vector<16x256xf32>
    %1 = arith.truncf %0 : vector<16x256xf32> to vector<16x256xbf16>
    %c0_1 = arith.constant 0 : index
    %c0_2 = arith.constant 0 : index
    %c0_3 = arith.constant 0 : index
    %2 = vector.load %arg2[%c0_1, %c0_2, %c0_3] : memref<1x256x512xbf16, #tpu.memory_space<vmem>>, vector<1x256x512xbf16>
    %3 = vector.shape_cast %2 : vector<1x256x512xbf16> to vector<256x512xbf16>
    %cst = arith.constant dense<0.000000e+00> : vector<16x512xf32>
    %4 = tpu.matmul %1, %3, %cst {dimension_numbers = #tpu.dot_dimension_numbers<[1], [0], [0], [1], [0, 0, 1, 1], [], []>} : vector<16x256xbf16>, vector<256x512xbf16>, vector<16x512xf32> -> vector<16x512xf32>
    %c0_4 = arith.constant 0 : index
    %c0_5 = arith.constant 0 : index
    %c0_6 = arith.constant 0 : index
    %5 = vector.load %arg3[%c0_4, %c0_5, %c0_6] : memref<1x1x512xf32, #tpu.memory_space<vmem>>, vector<1x1x512xf32>
    %6 = vector.shape_cast %5 : vector<1x1x512xf32> to vector<1x512xf32>
    %7 = vector.broadcast %6 : vector<1x512xf32> to vector<16x512xf32>
    %8 = arith.addf %4, %7 : vector<16x512xf32>
    %9 = arith.truncf %8 : vector<16x512xf32> to vector<16x512xbf16>
    %c0_7 = arith.constant 0 : index
    %c0_8 = arith.constant 0 : index
    %c0_9 = arith.constant 0 : index
    %10 = vector.load %arg4[%c0_7, %c0_8, %c0_9] : memref<1x16x512xbf16, #tpu.memory_space<vmem>>, vector<1x16x512xbf16>
    %11 = vector.shape_cast %10 : vector<1x16x512xbf16> to vector<16x512xbf16>
    %12 = vector.shape_cast %9 : vector<16x512xbf16> to vector<1x16x512xbf16>
    tpu.vector_store %arg4[%c0_7, %c0_8, %c0_9], %12 {strides = array<i32>} : memref<1x16x512xbf16, #tpu.memory_space<vmem>>, vector<1x16x512xbf16>,
    return
  }
  func.func @transform_0(%arg0: i32) -> (i32, i32) {
    %c0_i32 = arith.constant 0 : i32
    %c0_i32_0 = arith.constant 0 : i32
    %c0_i32_1 = arith.constant 0 : i32
    return %c0_i32, %c0_i32_0 : i32, i32
  }
  func.func @transform_1(%arg0: i32) -> (i32, i32, i32) {
    %c0_i32 = arith.constant 0 : i32
    %c0_i32_0 = arith.constant 0 : i32
    %c0_i32_1 = arith.constant 0 : i32
    return %arg0, %c0_i32, %c0_i32_0 : i32, i32, i32
  }
  func.func @transform_2(%arg0: i32) -> (i32, i32, i32) {
    %c0_i32 = arith.constant 0 : i32
    %c0_i32_0 = arith.constant 0 : i32
    %c0_i32_1 = arith.constant 0 : i32
    return %arg0, %c0_i32, %c0_i32_0 : i32, i32, i32
  }
  func.func @transform_3(%arg0: i32) -> (i32, i32, i32) {
    %c0_i32 = arith.constant 0 : i32
    %c0_i32_0 = arith.constant 0 : i32
    %c0_i32_1 = arith.constant 0 : i32
    return %arg0, %c0_i32, %c0_i32_0 : i32, i32, i32
  }
}

</mosaic_0001>

<llo_original>
// kernel: prepare_sequence.1
$region0: #{prepare_sequence.1}
  #allocation0 [shape = 'u32[]', space=smem, size = 0x4, offset = 0x4, fixed_abs, tag = 'smem constant byte address 0x4 - core index']
  #allocation1 [shape = 'u32[144,128]{1,0:T(1,128)}', space=vmem, size = 0x12000, scoped, tag = 'internal scratch']
  %s0 = inlined_call_operand.vmem [shape: f32[16,256], index: 0, kind: input, shape index: {}]
  %s1 = inlined_call_operand.hbm [shape: bf16[2,256,512], index: 1, kind: input, shape index: {}]
  %s2 = inlined_call_operand.vmem [shape: f32[2,1,512], index: 2, kind: input, shape index: {}]
  %s3 = inlined_call_operand.hbm [shape: bf16[2,16,512], index: 3, kind: output, shape index: {}]
  %s4 = sld [smem:[#allocation0]]
  $region49: #{prepare_sequence.1} parent=0
    _
  %s6 = ssub.s32 1, %s4
  %s7 = scalar_select 0, %s6, %s4
  $region1: #{prepare_sequence.1} parent=0
    #allocation2 [shape = 'u8[524288]{0}', space=vmem, size = 0x80000, scoped, tag = 'input window, operand 1']
    #allocation3 [shape = 's32[2]{0}', space=sflag, size = 0x8, scoped, tag = 'scoped memory for prepare_sequence.1']
    #allocation4 [shape = 's32[2]{0}', space=sflag, size = 0x8, scoped, tag = 'scoped memory for prepare_sequence.1']
    #allocation5 [shape = 'u8[32768]{0}', space=vmem, size = 0x8000, scoped, tag = 'output window, operand 0']
    %8 = vsyncpa [#allocation3], 0
    %s9 = scalar_lea.sflag [#allocation3], 1
    %10 = vsyncpa %s9, 0
    %11 = vsyncpa [#allocation4], 0
    %s12 = scalar_lea.sflag [#allocation4], 1
    %13 = vsyncpa %s12, 0
    loop: start=0, step=1, limit=4
    $region2: #{prepare_sequence.1} parent=1 // loop_pre_header
      _
    $region3: #{prepare_sequence.1} parent=1 // loop_header
      %s15 = sphi 0, %s19
      %p16 = scmp.ge.s32.totalorder %s15, 4
      %s23 = sphi 0, %s23
      %s25 = sphi 0, %s23
      %s26 = sphi 0, %s25
      %s40 = sphi 0, %s26
      %s46 = sphi 0, %s48
      %s49 = sphi 0, %s46
      %s50 = sphi 0, %s49
      %s66 = sphi 0, %s50
      %s72 = sphi 0, %s74
      %s75 = sphi 0, %s72
      %s76 = sphi 0, %s75
      %s92 = sphi 0, %s76
      %s98 = sphi 0, %s100
      %s101 = sphi 0, %s98
      %s102 = sphi 0, %s101
      %s118 = sphi 0, %s102
    $region4: #{prepare_sequence.1} parent=1 // loop_header_branch
      %18 = sbr.rel (%p16) target = $region8
    $region5: #{prepare_sequence.1} parent=1 // loop_body
      %s20 = ssub.s32 %s15, 1
      %s21 = ssub.s32 %s15, 2
      %s22 = sadd.s32 %s15, 1
      %s24 = sadd.s32 %s23, 1
      %p27 = scmp.eq.s32.totalorder %s15, 1
      %p28 = scmp.ne.s32.totalorder %s23, %s25
      %p29 = scmp.eq.s32.totalorder %s15, 0
      %p30 = por %p28, %p29
      %p31 = scmp.ne.s32.totalorder %s23, %s25
      %p32 = scmp.eq.s32.totalorder %s20, 1
      %p33 = por %p31, %p32
      %p34 = scmp.ne.s32.totalorder %s25, %s26
      %p35 = scmp.eq.s32.totalorder %s20, 0
      %p36 = por %p34, %p35
      %p37 = scmp.ne.s32.totalorder %s25, %s26
      %p38 = scmp.eq.s32.totalorder %s21, 1
      %p39 = por %p37, %p38
      %p41 = scmp.ne.s32.totalorder %s26, %s40
      %p42 = scmp.eq.s32.totalorder %s21, 0
      %p43 = por %p41, %p42
      %s44 = ssub.s32 %s15, %s22
      %p45 = scmp.eq.s32.totalorder %s44, 0
      %s47 = sadd.s32 %s46, 1
      %s48 = scalar_select %p45, %s46, %s47
      %p51 = pneg %p45
      %p52 = scmp.eq.s32.totalorder %s15, 1
      %p53 = por %p51, %p52
      %p54 = scmp.ne.s32.totalorder %s46, %s49
      %p55 = scmp.eq.s32.totalorder %s15, 0
      %p56 = por %p54, %p55
      %p57 = scmp.ne.s32.totalorder %s46, %s49
      %p58 = scmp.eq.s32.totalorder %s20, 1
      %p59 = por %p57, %p58
      %p60 = scmp.ne.s32.totalorder %s49, %s50
      %p61 = scmp.eq.s32.totalorder %s20, 0
      %p62 = por %p60, %p61
      %p63 = scmp.ne.s32.totalorder %s49, %s50
      %p64 = scmp.eq.s32.totalorder %s21, 1
      %p65 = por %p63, %p64
      %p67 = scmp.ne.s32.totalorder %s50, %s66
      %p68 = scmp.eq.s32.totalorder %s21, 0
      %p69 = por %p67, %p68
      %s70 = ssub.s32 %s15, %s22
      %p71 = scmp.eq.s32.totalorder %s70, 0
      %s73 = sadd.s32 %s72, 1
      %s74 = scalar_select %p71, %s72, %s73
      %p77 = pneg %p71
      %p78 = scmp.eq.s32.totalorder %s15, 1
      %p79 = por %p77, %p78
      %p80 = scmp.ne.s32.totalorder %s72, %s75
      %p81 = scmp.eq.s32.totalorder %s15, 0
      %p82 = por %p80, %p81
      %p83 = scmp.ne.s32.totalorder %s72, %s75
      %p84 = scmp.eq.s32.totalorder %s20, 1
      %p85 = por %p83, %p84
      %p86 = scmp.ne.s32.totalorder %s75, %s76
      %p87 = scmp.eq.s32.totalorder %s20, 0
      %p88 = por %p86, %p87
      %p89 = scmp.ne.s32.totalorder %s75, %s76
      %p90 = scmp.eq.s32.totalorder %s21, 1
      %p91 = por %p89, %p90
      %p93 = scmp.ne.s32.totalorder %s76, %s92
      %p94 = scmp.eq.s32.totalorder %s21, 0
      %p95 = por %p93, %p94
      %s96 = ssub.s32 %s15, %s22
      %p97 = scmp.eq.s32.totalorder %s96, 0
      %s99 = sadd.s32 %s98, 1
      %s100 = scalar_select %p97, %s98, %s99
      %p103 = pneg %p97
      %p104 = scmp.eq.s32.totalorder %s15, 1
      %p105 = por %p103, %p104
      %p106 = scmp.ne.s32.totalorder %s98, %s101
      %p107 = scmp.eq.s32.totalorder %s15, 0
      %p108 = por %p106, %p107
      %p109 = scmp.ne.s32.totalorder %s98, %s101
      %p110 = scmp.eq.s32.totalorder %s20, 1
      %p111 = por %p109, %p110
      %p112 = scmp.ne.s32.totalorder %s101, %s102
      %p113 = scmp.eq.s32.totalorder %s20, 0
      %p114 = por %p112, %p113
      %p115 = scmp.ne.s32.totalorder %s101, %s102
      %p116 = scmp.eq.s32.totalorder %s21, 1
      %p117 = por %p115, %p116
      %p119 = scmp.ne.s32.totalorder %s102, %s118
      %p120 = scmp.eq.s32.totalorder %s21, 0
      %p121 = por %p119, %p120
      %p122 = scmp.le.s32.totalorder 1, %s15
      %p123 = scmp.lt.s32.totalorder %s15, 3
      %p124 = pnand %p122, %p123
      %p125 = pneg %p124
      // Predicated region
      $region9: #{prepare_sequence.1} parent=5 // pred_check
        _
      $region10: #{prepare_sequence.1} parent=5 // pred_check_branch
        %127 = sbr.rel (%p124) target = $region12
      $region11: #{prepare_sequence.1} parent=5 // pred_region
        %s128 = ssub.s32 %s15, 1
        // Predicated region
        $region13: #{prepare_sequence.1} parent=11 // pred_check
          %p129 = pneg %p36
        $region14: #{prepare_sequence.1} parent=11 // pred_check_branch
          %131 = sbr.rel (%p129) target = $region16
        $region15: #{prepare_sequence.1} parent=11 // pred_region
          _
        $region16: #{prepare_sequence.1} parent=11 // pred_fallthru
          _
      $region12: #{prepare_sequence.1} parent=5 // pred_fallthru
        _
      %p132 = scmp.lt.s32.totalorder %s15, 2
      // Predicated region
      $region17: #{prepare_sequence.1} parent=5 // pred_check
        %p133 = pneg %p132
      $region18: #{prepare_sequence.1} parent=5 // pred_check_branch
        %135 = sbr.rel (%p133) target = $region20
      $region19: #{prepare_sequence.1} parent=5 // pred_region
        // Predicated region
        $region21: #{prepare_sequence.1} parent=19 // pred_check
          %p136 = pneg %p56
        $region22: #{prepare_sequence.1} parent=19 // pred_check_branch
          %138 = sbr.rel (%p136) target = $region24
        $region23: #{prepare_sequence.1} parent=19 // pred_region
          %s139 = sand.u32 %s46, 1
          %s140 = scalar_lea.sflag [#allocation3], %s139
          %s141 = sand.u32 %s46, 1
          %s142 = smul.addr %s141, 512
          %s143 = scalar_lea.vmem [#allocation2], %s142
          %s145 = ssub.s32 8192, 8192
          %146 = vsyncadd %s140, %s145
          %s147 = smul.addr %s15, 128
          %s148 = smul.addr %s147, 64
          %s149 = scalar_lea.hbm %s1, %s148
          %s150 = sshll.u32 %s143, 4
          %s151 = int_to_ptr.vmem [resolvable:$true] %s150
          %156 = dma.hbm_to_vmem [thread:$0]  %s149, 8192, %s151, %s140, 256, 256, 16
        $region24: #{prepare_sequence.1} parent=19 // pred_fallthru
          _
        // Predicated region
        $region25: #{prepare_sequence.1} parent=19 // pred_check
          %p157 = pneg %p82
        $region26: #{prepare_sequence.1} parent=19 // pred_check_branch
          %159 = sbr.rel (%p157) target = $region28
        $region27: #{prepare_sequence.1} parent=19 // pred_region
          %p160 = scmp.lt.s32.totalorder %s15, 1
          %s161 = scalar_select %p160, %s15, 1
          %s162 = smul.addr %s161, 4
          %s163 = scalar_lea.vmem %s2, %s162
        $region28: #{prepare_sequence.1} parent=19 // pred_fallthru
          _
      $region20: #{prepare_sequence.1} parent=5 // pred_fallthru
        _
      %p164 = scmp.le.s32.totalorder 1, %s15
      %p165 = scmp.lt.s32.totalorder %s15, 3
      %p166 = pnand %p164, %p165
      %p167 = pneg %p166
      // Predicated region
      $region29: #{prepare_sequence.1} parent=5 // pred_check
        _
      $region30: #{prepare_sequence.1} parent=5 // pred_check_branch
        %169 = sbr.rel (%p166) target = $region32
      $region31: #{prepare_sequence.1} parent=5 // pred_region
        %s170 = ssub.s32 %s15, 1
        %s171 = sand.u32 %s49, 1
        %s172 = scalar_lea.sflag [#allocation3], %s171
        %s173 = sand.u32 %s49, 1
        %s174 = smul.addr %s173, 512
        %s175 = scalar_lea.vmem [#allocation2], %s174
        // Predicated region
        $region33: #{prepare_sequence.1} parent=31 // pred_check
          %p176 = pneg %p62
        $region34: #{prepare_sequence.1} parent=31 // pred_check_branch
          %178 = sbr.rel (%p176) target = $region36
        $region35: #{prepare_sequence.1} parent=31 // pred_region
          %179 = dma.done %s172, 8192
        $region36: #{prepare_sequence.1} parent=31 // pred_fallthru
          _
        %p180 = pneg %p36
        %p181 = pneg %p33
        %s182 = sand.u32 %s49, 1
        %s183 = scalar_lea.sflag [#allocation3], %s182
        %s184 = sand.u32 %s49, 1
        %s185 = smul.addr %s184, 512
        %s186 = scalar_lea.vmem [#allocation2], %s185
        %p187 = pneg %p62
        %p188 = pneg %p59
        %p189 = scmp.lt.s32.totalorder %s20, 1
        %s190 = scalar_select %p189, %s20, 1
        %s191 = smul.addr %s190, 4
        %s192 = scalar_lea.vmem %s2, %s191
        %p193 = pneg %p88
        %p194 = pneg %p85
        %p195 = pneg %p114
        %p196 = pneg %p111
        %s197 = sand.u32 %s101, 1
        %s198 = scalar_lea.sflag [#allocation4], %s197
        %s199 = sand.u32 %s101, 1
        %s200 = smul.addr %s199, 32
        %s201 = scalar_lea.vmem [#allocation5], %s200
        %p202 = scmp.lt.s32.totalorder %s20, 1
        %s203 = scalar_select %p202, %s20, 1
        %s204 = smul.addr %s203, 4
        %s205 = scalar_lea.vmem %s2, %s204
        %v206 = vld [vmem:[%s0] sm:$0xff]
        %v207 = vld [vmem:[%s0 + $0x8] sm:$0xff]
        %v208 = vld [vmem:[%s0 + $0x10] sm:$0xff]
        %v209 = vld [vmem:[%s0 + $0x18] sm:$0xff]
        %v210 = vpack.c.bf16 %v208, %v206
        %v211 = vpack.c.bf16 %v209, %v207
        %v212 = vld [vmem:[%s175] sm:$0xff]
        %v213 = vld [vmem:[%s175 + $0x8] sm:$0xff]
        %v214 = vld [vmem:[%s175 + $0x10] sm:$0xff]
        %v215 = vld [vmem:[%s175 + $0x18] sm:$0xff]
        %v216 = vld [vmem:[%s175 + $0x20] sm:$0xff]
        %v217 = vld [vmem:[%s175 + $0x28] sm:$0xff]
        %v218 = vld [vmem:[%s175 + $0x30] sm:$0xff]
        %v219 = vld [vmem:[%s175 + $0x38] sm:$0xff]
        %v220 = vld [vmem:[%s175 + $0x40] sm:$0xff]
        %v221 = vld [vmem:[%s175 + $0x48] sm:$0xff]
        %v222 = vld [vmem:[%s175 + $0x50] sm:$0xff]
        %v223 = vld [vmem:[%s175 + $0x58] sm:$0xff]
        %v224 = vld [vmem:[%s175 + $0x60] sm:$0xff]
        %v225 = vld [vmem:[%s175 + $0x68] sm:$0xff]
        %v226 = vld [vmem:[%s175 + $0x70] sm:$0xff]
        %v227 = vld [vmem:[%s175 + $0x78] sm:$0xff]
        %v228 = vld [vmem:[%s175 + $0x80] sm:$0xff]
        %v229 = vld [vmem:[%s175 + $0x88] sm:$0xff]
        %v230 = vld [vmem:[%s175 + $0x90] sm:$0xff]
        %v231 = vld [vmem:[%s175 + $0x98] sm:$0xff]
        %v232 = vld [vmem:[%s175 + $0xa0] sm:$0xff]
        %v233 = vld [vmem:[%s175 + $0xa8] sm:$0xff]
        %v234 = vld [vmem:[%s175 + $0xb0] sm:$0xff]
        %v235 = vld [vmem:[%s175 + $0xb8] sm:$0xff]
        %v236 = vld [vmem:[%s175 + $0xc0] sm:$0xff]
        %v237 = vld [vmem:[%s175 + $0xc8] sm:$0xff]
        %v238 = vld [vmem:[%s175 + $0xd0] sm:$0xff]
        %v239 = vld [vmem:[%s175 + $0xd8] sm:$0xff]
        %v240 = vld [vmem:[%s175 + $0xe0] sm:$0xff]
        %v241 = vld [vmem:[%s175 + $0xe8] sm:$0xff]
        %v242 = vld [vmem:[%s175 + $0xf0] sm:$0xff]
        %v243 = vld [vmem:[%s175 + $0xf8] sm:$0xff]
        %v244 = vld [vmem:[%s175 + $0x100] sm:$0xff]
        %v245 = vld [vmem:[%s175 + $0x108] sm:$0xff]
        %v246 = vld [vmem:[%s175 + $0x110] sm:$0xff]
        %v247 = vld [vmem:[%s175 + $0x118] sm:$0xff]
        %v248 = vld [vmem:[%s175 + $0x120] sm:$0xff]
        %v249 = vld [vmem:[%s175 + $0x128] sm:$0xff]
        %v250 = vld [vmem:[%s175 + $0x130] sm:$0xff]
        %v251 = vld [vmem:[%s175 + $0x138] sm:$0xff]
        %v252 = vld [vmem:[%s175 + $0x140] sm:$0xff]
        %v253 = vld [vmem:[%s175 + $0x148] sm:$0xff]
        %v254 = vld [vmem:[%s175 + $0x150] sm:$0xff]
        %v255 = vld [vmem:[%s175 + $0x158] sm:$0xff]
        %v256 = vld [vmem:[%s175 + $0x160] sm:$0xff]
        %v257 = vld [vmem:[%s175 + $0x168] sm:$0xff]
        %v258 = vld [vmem:[%s175 + $0x170] sm:$0xff]
        %v259 = vld [vmem:[%s175 + $0x178] sm:$0xff]
        %v260 = vld [vmem:[%s175 + $0x180] sm:$0xff]
        %v261 = vld [vmem:[%s175 + $0x188] sm:$0xff]
        %v262 = vld [vmem:[%s175 + $0x190] sm:$0xff]
        %v263 = vld [vmem:[%s175 + $0x198] sm:$0xff]
        %v264 = vld [vmem:[%s175 + $0x1a0] sm:$0xff]
        %v265 = vld [vmem:[%s175 + $0x1a8] sm:$0xff]
        %v266 = vld [vmem:[%s175 + $0x1b0] sm:$0xff]
        %v267 = vld [vmem:[%s175 + $0x1b8] sm:$0xff]
        %v268 = vld [vmem:[%s175 + $0x1c0] sm:$0xff]
        %v269 = vld [vmem:[%s175 + $0x1c8] sm:$0xff]
        %v270 = vld [vmem:[%s175 + $0x1d0] sm:$0xff]
        %v271 = vld [vmem:[%s175 + $0x1d8] sm:$0xff]
        %v272 = vld [vmem:[%s175 + $0x1e0] sm:$0xff]
        %v273 = vld [vmem:[%s175 + $0x1e8] sm:$0xff]
        %v274 = vld [vmem:[%s175 + $0x1f0] sm:$0xff]
        %v275 = vld [vmem:[%s175 + $0x1f8] sm:$0xff]
        %v276 = vld [vmem:[%s205] sm:$0xf]
        %v278 = vlaneseq
        %v279 = vshrl.u32 %v278, 7
        %v280 = vsub.s32 0, %v279
        %v281 = vrot.slane %v276, %v280
        %v282 = vlaneseq
        %v283 = vshrl.u32 %v282, 7
        %v284 = vsub.s32 1, %v283
        %v285 = vrot.slane %v276, %v284
        %v286 = vlaneseq
        %v287 = vshrl.u32 %v286, 7
        %v288 = vsub.s32 2, %v287
        %v289 = vrot.slane %v276, %v288
        %v290 = vlaneseq
        %v291 = vshrl.u32 %v290, 7
        %v292 = vsub.s32 3, %v291
        %v293 = vrot.slane %v276, %v292
        %v362 = vunpack.c.l.b16 %v212
        %v363 = vunpack.c.h.b16 %v212
        %v364 = vunpack.c.l.b16 %v213
        %v365 = vunpack.c.h.b16 %v213
        %v366 = vunpack.c.l.b16 %v214
        %v367 = vunpack.c.h.b16 %v214
        %v368 = vunpack.c.l.b16 %v215
        %v369 = vunpack.c.h.b16 %v215
        %v370 = vunpack.c.l.b16 %v216
        %v371 = vunpack.c.h.b16 %v216
        %v372 = vunpack.c.l.b16 %v217
        %v373 = vunpack.c.h.b16 %v217
        %v374 = vunpack.c.l.b16 %v218
        %v375 = vunpack.c.h.b16 %v218
        %v376 = vunpack.c.l.b16 %v219
        %v377 = vunpack.c.h.b16 %v219
        %v378 = vunpack.c.l.b16 %v220
        %v379 = vunpack.c.h.b16 %v220
        %v380 = vunpack.c.l.b16 %v221
        %v381 = vunpack.c.h.b16 %v221
        %v382 = vunpack.c.l.b16 %v222
        %v383 = vunpack.c.h.b16 %v222
        %v384 = vunpack.c.l.b16 %v223
        %v385 = vunpack.c.h.b16 %v223
        %v386 = vunpack.c.l.b16 %v224
        %v387 = vunpack.c.h.b16 %v224
        %v388 = vunpack.c.l.b16 %v225
        %v389 = vunpack.c.h.b16 %v225
        %v390 = vunpack.c.l.b16 %v226
        %v391 = vunpack.c.h.b16 %v226
        %v392 = vunpack.c.l.b16 %v227
        %v393 = vunpack.c.h.b16 %v227
        %v394 = vunpack.c.l.b16 %v228
        %v395 = vunpack.c.h.b16 %v228
        %v396 = vunpack.c.l.b16 %v229
        %v397 = vunpack.c.h.b16 %v229
        %v398 = vunpack.c.l.b16 %v230
        %v399 = vunpack.c.h.b16 %v230
        %v400 = vunpack.c.l.b16 %v231
        %v401 = vunpack.c.h.b16 %v231
        %v402 = vunpack.c.l.b16 %v232
        %v403 = vunpack.c.h.b16 %v232
        %v404 = vunpack.c.l.b16 %v233
        %v405 = vunpack.c.h.b16 %v233
        %v406 = vunpack.c.l.b16 %v234
        %v407 = vunpack.c.h.b16 %v234
        %v408 = vunpack.c.l.b16 %v235
        %v409 = vunpack.c.h.b16 %v235
        %v410 = vunpack.c.l.b16 %v236
        %v411 = vunpack.c.h.b16 %v236
        %v412 = vunpack.c.l.b16 %v237
        %v413 = vunpack.c.h.b16 %v237
        %v414 = vunpack.c.l.b16 %v238
        %v415 = vunpack.c.h.b16 %v238
        %v416 = vunpack.c.l.b16 %v239
        %v417 = vunpack.c.h.b16 %v239
        %v418 = vunpack.c.l.b16 %v240
        %v419 = vunpack.c.h.b16 %v240
        %v420 = vunpack.c.l.b16 %v241
        %v421 = vunpack.c.h.b16 %v241
        %v422 = vunpack.c.l.b16 %v242
        %v423 = vunpack.c.h.b16 %v242
        %v424 = vunpack.c.l.b16 %v243
        %v425 = vunpack.c.h.b16 %v243
        %v426 = vunpack.c.l.b16 %v244
        %v427 = vunpack.c.h.b16 %v244
        %v428 = vunpack.c.l.b16 %v245
        %v429 = vunpack.c.h.b16 %v245
        %v430 = vunpack.c.l.b16 %v246
        %v431 = vunpack.c.h.b16 %v246
        %v432 = vunpack.c.l.b16 %v247
        %v433 = vunpack.c.h.b16 %v247
        %v434 = vunpack.c.l.b16 %v248
        %v435 = vunpack.c.h.b16 %v248
        %v436 = vunpack.c.l.b16 %v249
        %v437 = vunpack.c.h.b16 %v249
        %v438 = vunpack.c.l.b16 %v250
        %v439 = vunpack.c.h.b16 %v250
        %v440 = vunpack.c.l.b16 %v251
        %v441 = vunpack.c.h.b16 %v251
        %v442 = vunpack.c.l.b16 %v252
        %v443 = vunpack.c.h.b16 %v252
        %v444 = vunpack.c.l.b16 %v253
        %v445 = vunpack.c.h.b16 %v253
        %v446 = vunpack.c.l.b16 %v254
        %v447 = vunpack.c.h.b16 %v254
        %v448 = vunpack.c.l.b16 %v255
        %v449 = vunpack.c.h.b16 %v255
        %v450 = vunpack.c.l.b16 %v256
        %v451 = vunpack.c.h.b16 %v256
        %v452 = vunpack.c.l.b16 %v257
        %v453 = vunpack.c.h.b16 %v257
        %v454 = vunpack.c.l.b16 %v258
        %v455 = vunpack.c.h.b16 %v258
        %v456 = vunpack.c.l.b16 %v259
        %v457 = vunpack.c.h.b16 %v259
        %v458 = vunpack.c.l.b16 %v260
        %v459 = vunpack.c.h.b16 %v260
        %v460 = vunpack.c.l.b16 %v261
        %v461 = vunpack.c.h.b16 %v261
        %v462 = vunpack.c.l.b16 %v262
        %v463 = vunpack.c.h.b16 %v262
        %v464 = vunpack.c.l.b16 %v263
        %v465 = vunpack.c.h.b16 %v263
        %v466 = vunpack.c.l.b16 %v264
        %v467 = vunpack.c.h.b16 %v264
        %v468 = vunpack.c.l.b16 %v265
        %v469 = vunpack.c.h.b16 %v265
        %v470 = vunpack.c.l.b16 %v266
        %v471 = vunpack.c.h.b16 %v266
        %v472 = vunpack.c.l.b16 %v267
        %v473 = vunpack.c.h.b16 %v267
        %v474 = vunpack.c.l.b16 %v268
        %v475 = vunpack.c.h.b16 %v268
        %v476 = vunpack.c.l.b16 %v269
        %v477 = vunpack.c.h.b16 %v269
        %v478 = vunpack.c.l.b16 %v270
        %v479 = vunpack.c.h.b16 %v270
        %v480 = vunpack.c.l.b16 %v271
        %v481 = vunpack.c.h.b16 %v271
        %v482 = vunpack.c.l.b16 %v272
        %v483 = vunpack.c.h.b16 %v272
        %v484 = vunpack.c.l.b16 %v273
        %v485 = vunpack.c.h.b16 %v273
        %v486 = vunpack.c.l.b16 %v274
        %v487 = vunpack.c.h.b16 %v274
        %v488 = vunpack.c.l.b16 %v275
        %v489 = vunpack.c.h.b16 %v275
        %v490 = vpack.c.b16 %v366, %v362
        %v491 = vpack.c.b16 %v367, %v363
        %v492 = vpack.c.b16 %v368, %v364
        %v493 = vpack.c.b16 %v369, %v365
        %v494 = vpack.c.b16 %v374, %v370
        %v495 = vpack.c.b16 %v375, %v371
        %v496 = vpack.c.b16 %v376, %v372
        %v497 = vpack.c.b16 %v377, %v373
        %v498 = vpack.c.b16 %v382, %v378
        %v499 = vpack.c.b16 %v383, %v379
        %v500 = vpack.c.b16 %v384, %v380
        %v501 = vpack.c.b16 %v385, %v381
        %v502 = vpack.c.b16 %v390, %v386
        %v503 = vpack.c.b16 %v391, %v387
        %v504 = vpack.c.b16 %v392, %v388
        %v505 = vpack.c.b16 %v393, %v389
        %v506 = vpack.c.b16 %v398, %v394
        %v507 = vpack.c.b16 %v399, %v395
        %v508 = vpack.c.b16 %v400, %v396
        %v509 = vpack.c.b16 %v401, %v397
        %v510 = vpack.c.b16 %v406, %v402
        %v511 = vpack.c.b16 %v407, %v403
        %v512 = vpack.c.b16 %v408, %v404
        %v513 = vpack.c.b16 %v409, %v405
        %v514 = vpack.c.b16 %v414, %v410
        %v515 = vpack.c.b16 %v415, %v411
        %v516 = vpack.c.b16 %v416, %v412
        %v517 = vpack.c.b16 %v417, %v413
        %v518 = vpack.c.b16 %v422, %v418
        %v519 = vpack.c.b16 %v423, %v419
        %v520 = vpack.c.b16 %v424, %v420
        %v521 = vpack.c.b16 %v425, %v421
        %v522 = vpack.c.b16 %v430, %v426
        %v523 = vpack.c.b16 %v431, %v427
        %v524 = vpack.c.b16 %v432, %v428
        %v525 = vpack.c.b16 %v433, %v429
        %v526 = vpack.c.b16 %v438, %v434
        %v527 = vpack.c.b16 %v439, %v435
        %v528 = vpack.c.b16 %v440, %v436
        %v529 = vpack.c.b16 %v441, %v437
        %v530 = vpack.c.b16 %v446, %v442
        %v531 = vpack.c.b16 %v447, %v443
        %v532 = vpack.c.b16 %v448, %v444
        %v533 = vpack.c.b16 %v449, %v445
        %v534 = vpack.c.b16 %v454, %v450
        %v535 = vpack.c.b16 %v455, %v451
        %v536 = vpack.c.b16 %v456, %v452
        %v537 = vpack.c.b16 %v457, %v453
        %v538 = vpack.c.b16 %v462, %v458
        %v539 = vpack.c.b16 %v463, %v459
        %v540 = vpack.c.b16 %v464, %v460
        %v541 = vpack.c.b16 %v465, %v461
        %v542 = vpack.c.b16 %v470, %v466
        %v543 = vpack.c.b16 %v471, %v467
        %v544 = vpack.c.b16 %v472, %v468
        %v545 = vpack.c.b16 %v473, %v469
        %v546 = vpack.c.b16 %v478, %v474
        %v547 = vpack.c.b16 %v479, %v475
        %v548 = vpack.c.b16 %v480, %v476
        %v549 = vpack.c.b16 %v481, %v477
        %v550 = vpack.c.b16 %v486, %v482
        %v551 = vpack.c.b16 %v487, %v483
        %v552 = vpack.c.b16 %v488, %v484
        %v553 = vpack.c.b16 %v489, %v485
        %618 = vmatprep.subr.bf16.mxu0 %v491
        %619 = vmatpush1.bf16.msra.mxu0 %v490
        %620 = vmatprep.subr.bf16.mxu0 %v495
        %621 = vmatpush1.bf16.msra.mxu0 %v494
        %622 = vmatprep.subr.bf16.mxu0 %v499
        %623 = vmatpush1.bf16.msra.mxu0 %v498
        %624 = vmatprep.subr.bf16.mxu0 %v503
        %625 = vmatpush1.bf16.msra.mxu0 %v502
        %626 = vmatprep.subr.bf16.mxu0 %v507
        %627 = vmatpush1.bf16.msra.mxu0 %v506
        %628 = vmatprep.subr.bf16.mxu0 %v511
        %629 = vmatpush1.bf16.msra.mxu0 %v510
        %630 = vmatprep.subr.bf16.mxu0 %v515
        %631 = vmatpush1.bf16.msra.mxu0 %v514
        %632 = vmatprep.subr.bf16.mxu0 %v519
        %633 = vmatpush1.bf16.msra.mxu0 %v518
        %634 = vmatprep.subr.bf16.mxu0 %v523
        %635 = vmatpush1.bf16.msra.mxu0 %v522
        %636 = vmatprep.subr.bf16.mxu0 %v527
        %637 = vmatpush1.bf16.msra.mxu0 %v526
        %638 = vmatprep.subr.bf16.mxu0 %v531
        %639 = vmatpush1.bf16.msra.mxu0 %v530
        %640 = vmatprep.subr.bf16.mxu0 %v535
        %641 = vmatpush1.bf16.msra.mxu0 %v534
        %642 = vmatprep.subr.bf16.mxu0 %v539
        %643 = vmatpush1.bf16.msra.mxu0 %v538
        %644 = vmatprep.subr.bf16.mxu0 %v543
        %645 = vmatpush1.bf16.msra.mxu0 %v542
        %646 = vmatprep.subr.bf16.mxu0 %v547
        %647 = vmatpush1.bf16.msra.mxu0 %v546
        %648 = vmatprep.subr.bf16.mxu0 %v551
        %649 = vmatpush1.bf16.msra.mxu0 %v550
        %650 = vmatprep.mubr.bf16.mxu0 %v211
        %651 = vmatmul.mubr.bf16.gmra.mrb[0].mxu0 %v210
        %v652 = vpop.f32.mrb[0].mxu0
        %v653 = vadd.f32 %v281, %v652
        %v654 = vpop.f32.mrb[0].mxu0
        %v655 = vadd.f32 %v285, %v654
        %v656 = vpop.f32.mrb[0].mxu0
        %v657 = vadd.f32 %v281, %v656
        %v658 = vpop.f32.mrb[0].mxu0
        %v659 = vadd.f32 %v285, %v658
        %660 = vdwg.mxu0
        %661 = vmatprep.subr.bf16.mxu0 %v493
        %662 = vmatpush1.bf16.msra.mxu0 %v492
        %663 = vmatprep.subr.bf16.mxu0 %v497
        %664 = vmatpush1.bf16.msra.mxu0 %v496
        %665 = vmatprep.subr.bf16.mxu0 %v501
        %666 = vmatpush1.bf16.msra.mxu0 %v500
        %667 = vmatprep.subr.bf16.mxu0 %v505
        %668 = vmatpush1.bf16.msra.mxu0 %v504
        %669 = vmatprep.subr.bf16.mxu0 %v509
        %670 = vmatpush1.bf16.msra.mxu0 %v508
        %671 = vmatprep.subr.bf16.mxu0 %v513
        %672 = vmatpush1.bf16.msra.mxu0 %v512
        %673 = vmatprep.subr.bf16.mxu0 %v517
        %674 = vmatpush1.bf16.msra.mxu0 %v516
        %675 = vmatprep.subr.bf16.mxu0 %v521
        %676 = vmatpush1.bf16.msra.mxu0 %v520
        %677 = vmatprep.subr.bf16.mxu0 %v525
        %678 = vmatpush1.bf16.msra.mxu0 %v524
        %679 = vmatprep.subr.bf16.mxu0 %v529
        %680 = vmatpush1.bf16.msra.mxu0 %v528
        %681 = vmatprep.subr.bf16.mxu0 %v533
        %682 = vmatpush1.bf16.msra.mxu0 %v532
        %683 = vmatprep.subr.bf16.mxu0 %v537
        %684 = vmatpush1.bf16.msra.mxu0 %v536
        %685 = vmatprep.subr.bf16.mxu0 %v541
        %686 = vmatpush1.bf16.msra.mxu0 %v540
        %687 = vmatprep.subr.bf16.mxu0 %v545
        %688 = vmatpush1.bf16.msra.mxu0 %v544
        %689 = vmatprep.subr.bf16.mxu0 %v549
        %690 = vmatpush1.bf16.msra.mxu0 %v548
        %691 = vmatprep.subr.bf16.mxu0 %v553
        %692 = vmatpush1.bf16.msra.mxu0 %v552
        %693 = vmatprep.mubr.bf16.mxu0 %v211
        %694 = vmatmul.mubr.bf16.gmra.mrb[0].mxu0 %v210
        %v695 = vpop.f32.mrb[0].mxu0
        %v696 = vadd.f32 %v289, %v695
        %v697 = vpop.f32.mrb[0].mxu0
        %v698 = vadd.f32 %v293, %v697
        %v699 = vpop.f32.mrb[0].mxu0
        %v700 = vadd.f32 %v289, %v699
        %v701 = vpop.f32.mrb[0].mxu0
        %v702 = vadd.f32 %v293, %v701
        %703 = vdwg.mxu0
        %v704 = vpack.c.bf16 %v657, %v653
        %v705 = vpack.c.bf16 %v659, %v655
        %v706 = vpack.c.bf16 %v700, %v696
        %v707 = vpack.c.bf16 %v702, %v698
        %v712 = vunpack.c.l.b16 %v704
        %v713 = vunpack.c.l.b16 %v705
        %v714 = vunpack.c.l.b16 %v706
        %v715 = vunpack.c.l.b16 %v707
        %v716 = vunpack.c.h.b16 %v704
        %v717 = vunpack.c.h.b16 %v705
        %v718 = vunpack.c.h.b16 %v706
        %v719 = vunpack.c.h.b16 %v707
        %v720 = vpack.c.b16 %v713, %v712
        %v721 = vpack.c.b16 %v715, %v714
        %v722 = vpack.c.b16 %v717, %v716
        %v723 = vpack.c.b16 %v719, %v718
        %728 = vst [vmem:[%s201] sm:$0xff] %v720
        %729 = vst [vmem:[%s201 + $0x8] sm:$0xff] %v721
        %730 = vst [vmem:[%s201 + $0x10] sm:$0xff] %v722
        %731 = vst [vmem:[%s201 + $0x18] sm:$0xff] %v723
        %s732 = sand.u32 %s101, 1
        %s733 = scalar_lea.sflag [#allocation4], %s732
        %s734 = sand.u32 %s101, 1
        %s735 = smul.addr %s734, 32
        %s736 = scalar_lea.vmem [#allocation5], %s735
        // Predicated region
        $region37: #{prepare_sequence.1} parent=31 // pred_check
          %p737 = pneg %p111
        $region38: #{prepare_sequence.1} parent=31 // pred_check_branch
          %739 = sbr.rel (%p737) target = $region40
        $region39: #{prepare_sequence.1} parent=31 // pred_region
          %s741 = ssub.s32 512, 512
          %742 = vsyncadd %s733, %s741
          %s743 = smul.addr %s20, 8
          %s744 = smul.addr %s743, 64
          %s745 = scalar_lea.hbm %s3, %s744
          %s746 = sshll.u32 %s736, 4
          %s747 = int_to_ptr.vmem [resolvable:$true] %s746
          %752 = dma.vmem_to_hbm [thread:$0]  %s747, 512, %s745, %s733, 256, 256, 16
        $region40: #{prepare_sequence.1} parent=31 // pred_fallthru
          _
      $region32: #{prepare_sequence.1} parent=5 // pred_fallthru
        _
      %p753 = scmp.le.s32.totalorder 2, %s15
      // Predicated region
      $region41: #{prepare_sequence.1} parent=5 // pred_check
        %p754 = pneg %p753
      $region42: #{prepare_sequence.1} parent=5 // pred_check_branch
        %756 = sbr.rel (%p754) target = $region44
      $region43: #{prepare_sequence.1} parent=5 // pred_region
        %s757 = ssub.s32 %s15, 2
        // Predicated region
        $region45: #{prepare_sequence.1} parent=43 // pred_check
          %p758 = pneg %p117
        $region46: #{prepare_sequence.1} parent=43 // pred_check_branch
          %760 = sbr.rel (%p758) target = $region48
        $region47: #{prepare_sequence.1} parent=43 // pred_region
          %s761 = sand.u32 %s102, 1
          %s762 = scalar_lea.sflag [#allocation4], %s761
          %s763 = sand.u32 %s102, 1
          %s764 = smul.addr %s763, 32
          %s765 = scalar_lea.vmem [#allocation5], %s764
          %766 = dma.done %s762, 512
        $region48: #{prepare_sequence.1} parent=43 // pred_fallthru
          _
      $region44: #{prepare_sequence.1} parent=5 // pred_fallthru
        _
    $region6: #{prepare_sequence.1} parent=1 // loop_footer
      %s19 = sadd.s32 1, %s15
    $region7: #{prepare_sequence.1} parent=1 // loop_footer_branch
      %14 = sbr.rel target = $region3
    $region8: #{prepare_sequence.1} parent=1 // loop_exit
      _
    %767 = vsyncpa [#allocation3], 1
    %s768 = scalar_lea.sflag [#allocation3], 1
    %769 = vsyncpa %s768, 1
    %770 = vsyncpa [#allocation4], 1
    %s771 = scalar_lea.sflag [#allocation4], 1
    %772 = vsyncpa %s771, 1

</llo_original>
